<compile_context>
chip_gen: v7x
topology: tpu7x:2x2x1
jax: 0.10.0
libtpu: 0.0.40
codegen_flags: <defaults>
</compile_context>

<pallas_src>
import jax
import jax.numpy as jnp
from jax.experimental import pallas as pl
from jax.experimental.pallas import tpu as pltpu

_LANE = 128


def _round_up(n, m):
    return ((n + m - 1) // m) * m


def _pad2(a, rows, cols):
    return jnp.pad(a, ((0, rows - a.shape[0]), (0, cols - a.shape[1])))


def mlp_kernel(xt_ref, w1_ref, b1_ref, w2_ref, b2_ref, w3_ref, b3_ref, o_ref):
    xt = xt_ref[...]                                              # (Vp, TB) bf16

    # Layer A: Linear + ReLU   (yA^T = W1 @ x^T + b1)
    h = jnp.dot(w1_ref[...], xt, preferred_element_type=jnp.float32)
    h = jnp.maximum(h + b1_ref[...], 0.0)                         # (xAp, TB) f32

    # Layer B: Linear + ReLU   (yB^T = W2 @ yA^T + b2)
    h = jnp.dot(w2_ref[...], h.astype(jnp.bfloat16),
                preferred_element_type=jnp.float32)
    h = jnp.maximum(h + b2_ref[...], 0.0)                         # (xBp, TB) f32

    # Layer C: out_features == 1 -> VPU multiply + sublane (XLU) reduction,
    # avoiding an MXU pass that would use a single output column.
    out = jnp.sum(h * w3_ref[...], axis=0, keepdims=True) + b3_ref[...]  # (1, TB)
    o_ref[...] = out.astype(o_ref.dtype)


def neural_network_forward(x, params, batch_tile=None):
    """Fused 3-layer MLP forward (torch.nn.Linear parameter layout).

    x: (batch, variables_count) float32
    params: w1 (xA, V), b1 (xA,), w2 (xB, xA), b2 (xB,), w3 (1, xB), b3 (1,)
    returns (batch, 1) float32
    """
    batch, v = x.shape
    w1, b1 = params["w1"], params["b1"]
    w2, b2 = params["w2"], params["b2"]
    w3, b3 = params["w3"], params["b3"]
    xa, xb = w1.shape[0], w2.shape[0]

    vp, xap, xbp = (_round_up(d, _LANE) for d in (v, xa, xb))
    if batch_tile is None:
        batch_tile = min(512, _round_up(batch, _LANE))
    batch_p = _round_up(batch, batch_tile)
    n_tiles = batch_p // batch_tile

    f32, bf16 = jnp.float32, jnp.bfloat16

    # Transposed + zero-padded operands (layout plumbing in the wrapper).
    xt = _pad2(x.astype(f32), batch_p, vp).T.astype(bf16)          # (vp, batch_p)
    w1p = _pad2(w1, xap, vp).astype(bf16)                          # (xap, vp)
    w2p = _pad2(w2, xbp, xap).astype(bf16)                         # (xbp, xap)
    w3p = _pad2(w3.reshape(-1, 1), xbp, 1).astype(f32)             # (xbp, 1)
    b1p = _pad2(b1.reshape(-1, 1), xap, 1).astype(f32)             # (xap, 1)
    b2p = _pad2(b2.reshape(-1, 1), xbp, 1).astype(f32)             # (xbp, 1)
    b3p = b3.reshape(1, 1).astype(f32)                             # (1, 1)

    def resident(shape):
        return pl.BlockSpec(shape, lambda i: (0, 0))

    flops = 2 * batch_p * (vp * xap + xap * xbp + xbp)
    bytes_accessed = int(
        xt.size * 2 + w1p.size * 2 + w2p.size * 2
        + (b1p.size + b2p.size + w3p.size + b3p.size) * 4
        + batch_p * 4)

    out_row = pl.pallas_call(
        mlp_kernel,
        out_shape=jax.ShapeDtypeStruct((1, batch_p), f32),
        grid_spec=pltpu.PrefetchScalarGridSpec(
            num_scalar_prefetch=0,
            grid=(n_tiles,),
            in_specs=[
                pl.BlockSpec((vp, batch_tile), lambda i: (0, i)),   # x^T tile
                resident((xap, vp)),                                # W1
                resident((xap, 1)),                                 # b1
                resident((xbp, xap)),                               # W2
                resident((xbp, 1)),                                 # b2
                resident((xbp, 1)),                                 # w3 column
                resident((1, 1)),                                   # b3
            ],
            out_specs=pl.BlockSpec((1, batch_tile), lambda i: (0, i)),
        ),
        compiler_params=pltpu.CompilerParams(
            dimension_semantics=("parallel",),
            vmem_limit_bytes=32 * 1024 * 1024,
        ),
        cost_estimate=pl.CostEstimate(
            flops=flops, transcendentals=0, bytes_accessed=bytes_accessed),
    )(xt, w1p, b1p, w2p, b2p, w3p, b3p)

    return out_row[0, :batch].reshape(batch, 1)


def init_params(key, variables_count, xA, xB):
    """torch.nn.Linear-style init: W (out, in), b (out,), uniform(+-1/sqrt(fan_in))."""
    ks = jax.random.split(key, 6)

    def lin(kw, kb, fan_in, fan_out):
        bound = 1.0 / jnp.sqrt(float(fan_in))
        w = jax.random.uniform(kw, (fan_out, fan_in), jnp.float32, -bound, bound)
        b = jax.random.uniform(kb, (fan_out,), jnp.float32, -bound, bound)
        return w, b

    w1, b1 = lin(ks[0], ks[1], variables_count, xA)
    w2, b2 = lin(ks[2], ks[3], xA, xB)
    w3, b3 = lin(ks[4], ks[5], xB, 1)
    return {"w1": w1, "b1": b1, "w2": w2, "b2": b2, "w3": w3, "b3": b3}


def reference_forward(x, p):
    """Exact fp32 reference of the PyTorch module."""
    yA = jnp.maximum(x @ p["w1"].T + p["b1"], 0.0)
    yB = jnp.maximum(yA @ p["w2"].T + p["b2"], 0.0)
    return yB @ p["w3"].T + p["b3"]


def reference_forward_kernel_numerics(x, p):
    """Reference that mirrors the kernel's bf16-matmul / fp32-accumulate numerics."""
    bf16, f32 = jnp.bfloat16, jnp.float32
    yA = jnp.maximum(
        jnp.dot(x.astype(bf16), p["w1"].T.astype(bf16),
                preferred_element_type=f32) + p["b1"], 0.0)
    yB = jnp.maximum(
        jnp.dot(yA.astype(bf16), p["w2"].T.astype(bf16),
                preferred_element_type=f32) + p["b2"], 0.0)
    return jnp.dot(yB, p["w3"].T, preferred_element_type=f32) + p["b3"]


if __name__ == "__main__":
    variables_count = 16   # input variables
    xA = 32                # first hidden layer size
    xB = 32                # second hidden layer size
    batch = 8

    key = jax.random.PRNGKey(0)
    kx, kp = jax.random.split(key)

    x = jax.random.normal(kx, (batch, variables_count), dtype=jnp.float32)
    params = init_params(kp, variables_count, xA, xB)

    out = jax.block_until_ready(neural_network_forward(x, params))
    assert out.shape == (batch, 1)

    ref_bf16 = reference_forward_kernel_numerics(x, params)
    ref_f32 = reference_forward(x, params)
    assert jnp.allclose(out, ref_bf16, atol=2e-3, rtol=2e-3)
    assert jnp.allclose(out, ref_f32, atol=1e-1, rtol=1e-1)

    print("KERNEL_OK")
</pallas_src>

<mosaic_0001>
module attributes {stable_mosaic.version = 11 : i64} {
  func.func @mlp_kernel(%arg0: i32, %arg1: memref<128x128xbf16, #tpu.memory_space<vmem>>, %arg2: memref<128x128xbf16, #tpu.memory_space<vmem>>, %arg3: memref<128x1xf32, #tpu.memory_space<vmem>>, %arg4: memref<128x128xbf16, #tpu.memory_space<vmem>>, %arg5: memref<128x1xf32, #tpu.memory_space<vmem>>, %arg6: memref<128x1xf32, #tpu.memory_space<vmem>>, %arg7: memref<1x1xf32, #tpu.memory_space<vmem>>, %arg8: memref<1x128xf32, #tpu.memory_space<vmem>>) attributes {dimension_semantics = [#tpu.dimension_semantics<parallel>], iteration_bounds = array<i64: 1>, scalar_prefetch = 0 : i64, scratch_operands = 0 : i64, tpu.core_type = #tpu.core_type<tc>, window_params = [{transform_indices = @transform_0, window_bounds = array<i64: 128, 128>}, {pipeline_mode = #tpu.pipeline_mode<synchronous>, transform_indices = @transform_1, window_bounds = array<i64: 128, 128>}, {pipeline_mode = #tpu.pipeline_mode<synchronous>, transform_indices = @transform_2, window_bounds = array<i64: 128, 1>}, {pipeline_mode = #tpu.pipeline_mode<synchronous>, transform_indices = @transform_3, window_bounds = array<i64: 128, 128>}, {pipeline_mode = #tpu.pipeline_mode<synchronous>, transform_indices = @transform_4, window_bounds = array<i64: 128, 1>}, {pipeline_mode = #tpu.pipeline_mode<synchronous>, transform_indices = @transform_5, window_bounds = array<i64: 128, 1>}, {pipeline_mode = #tpu.pipeline_mode<synchronous>, transform_indices = @transform_6, window_bounds = array<i64: 1, 1>}, {transform_indices = @transform_7, window_bounds = array<i64: 1, 128>}]} {
    %c0 = arith.constant 0 : index
    %c0_0 = arith.constant 0 : index
    %0 = vector.load %arg1[%c0, %c0_0] : memref<128x128xbf16, #tpu.memory_space<vmem>>, vector<128x128xbf16>
    %c0_1 = arith.constant 0 : index
    %c0_2 = arith.constant 0 : index
    %1 = vector.load %arg2[%c0_1, %c0_2] : memref<128x128xbf16, #tpu.memory_space<vmem>>, vector<128x128xbf16>
    %cst = arith.constant dense<0.000000e+00> : vector<128x128xf32>
    %2 = tpu.matmul %1, %0, %cst {dimension_numbers = #tpu.dot_dimension_numbers<[1], [0], [0], [1], [0, 0, 1, 1], [], []>} : vector<128x128xbf16>, vector<128x128xbf16>, vector<128x128xf32> -> vector<128x128xf32>
    %c0_3 = arith.constant 0 : index
    %c0_4 = arith.constant 0 : index
    %3 = vector.load %arg3[%c0_3, %c0_4] : memref<128x1xf32, #tpu.memory_space<vmem>>, vector<128x1xf32>
    %4 = vector.broadcast %3 : vector<128x1xf32> to vector<128x128xf32>
    %5 = arith.addf %2, %4 : vector<128x128xf32>
    %cst_5 = arith.constant 0.000000e+00 : f32
    %6 = vector.broadcast %cst_5 : f32 to vector<128x128xf32>
    %7 = arith.maximumf %5, %6 : vector<128x128xf32>
    %c0_6 = arith.constant 0 : index
    %c0_7 = arith.constant 0 : index
    %8 = vector.load %arg4[%c0_6, %c0_7] : memref<128x128xbf16, #tpu.memory_space<vmem>>, vector<128x128xbf16>
    %9 = arith.truncf %7 : vector<128x128xf32> to vector<128x128xbf16>
    %cst_8 = arith.constant dense<0.000000e+00> : vector<128x128xf32>
    %10 = tpu.matmul %8, %9, %cst_8 {dimension_numbers = #tpu.dot_dimension_numbers<[1], [0], [0], [1], [0, 0, 1, 1], [], []>} : vector<128x128xbf16>, vector<128x128xbf16>, vector<128x128xf32> -> vector<128x128xf32>
    %c0_9 = arith.constant 0 : index
    %c0_10 = arith.constant 0 : index
    %11 = vector.load %arg5[%c0_9, %c0_10] : memref<128x1xf32, #tpu.memory_space<vmem>>, vector<128x1xf32>
    %12 = vector.broadcast %11 : vector<128x1xf32> to vector<128x128xf32>
    %13 = arith.addf %10, %12 : vector<128x128xf32>
    %cst_11 = arith.constant 0.000000e+00 : f32
    %14 = vector.broadcast %cst_11 : f32 to vector<128x128xf32>
    %15 = arith.maximumf %13, %14 : vector<128x128xf32>
    %c0_12 = arith.constant 0 : index
    %c0_13 = arith.constant 0 : index
    %16 = vector.load %arg6[%c0_12, %c0_13] : memref<128x1xf32, #tpu.memory_space<vmem>>, vector<128x1xf32>
    %17 = vector.broadcast %16 : vector<128x1xf32> to vector<128x128xf32>
    %18 = arith.mulf %15, %17 : vector<128x128xf32>
    %cst_14 = arith.constant dense<0.000000e+00> : vector<128xf32>
    %19 = vector.multi_reduction <add>, %18, %cst_14 [0] : vector<128x128xf32> to vector<128xf32>
    %20 = vector.shape_cast %19 : vector<128xf32> to vector<1x128xf32>
    %c0_15 = arith.constant 0 : index
    %c0_16 = arith.constant 0 : index
    %21 = vector.load %arg7[%c0_15, %c0_16] : memref<1x1xf32, #tpu.memory_space<vmem>>, vector<1x1xf32>
    %22 = vector.broadcast %21 : vector<1x1xf32> to vector<1x128xf32>
    %23 = arith.addf %20, %22 : vector<1x128xf32>
    %c0_17 = arith.constant 0 : index
    %c0_18 = arith.constant 0 : index
    %24 = vector.load %arg8[%c0_17, %c0_18] : memref<1x128xf32, #tpu.memory_space<vmem>>, vector<1x128xf32>
    tpu.vector_store %arg8[%c0_17, %c0_18], %23 {strides = array<i32>} : memref<1x128xf32, #tpu.memory_space<vmem>>, vector<1x128xf32>,
    return
  }
  func.func @transform_0(%arg0: i32) -> (i32, i32) {
    %c0_i32 = arith.constant 0 : i32
    %c0_i32_0 = arith.constant 0 : i32
    return %c0_i32, %arg0 : i32, i32
  }
  func.func @transform_1(%arg0: i32) -> (i32, i32) {
    %c0_i32 = arith.constant 0 : i32
    %c0_i32_0 = arith.constant 0 : i32
    %c0_i32_1 = arith.constant 0 : i32
    return %c0_i32, %c0_i32_0 : i32, i32
  }
  func.func @transform_2(%arg0: i32) -> (i32, i32) {
    %c0_i32 = arith.constant 0 : i32
    %c0_i32_0 = arith.constant 0 : i32
    %c0_i32_1 = arith.constant 0 : i32
    return %c0_i32, %c0_i32_0 : i32, i32
  }
  func.func @transform_3(%arg0: i32) -> (i32, i32) {
    %c0_i32 = arith.constant 0 : i32
    %c0_i32_0 = arith.constant 0 : i32
    %c0_i32_1 = arith.constant 0 : i32
    return %c0_i32, %c0_i32_0 : i32, i32
  }
  func.func @transform_4(%arg0: i32) -> (i32, i32) {
    %c0_i32 = arith.constant 0 : i32
    %c0_i32_0 = arith.constant 0 : i32
    %c0_i32_1 = arith.constant 0 : i32
    return %c0_i32, %c0_i32_0 : i32, i32
  }
  func.func @transform_5(%arg0: i32) -> (i32, i32) {
    %c0_i32 = arith.constant 0 : i32
    %c0_i32_0 = arith.constant 0 : i32
    %c0_i32_1 = arith.constant 0 : i32
    return %c0_i32, %c0_i32_0 : i32, i32
  }
  func.func @transform_6(%arg0: i32) -> (i32, i32) {
    %c0_i32 = arith.constant 0 : i32
    %c0_i32_0 = arith.constant 0 : i32
    %c0_i32_1 = arith.constant 0 : i32
    return %c0_i32, %c0_i32_0 : i32, i32
  }
  func.func @transform_7(%arg0: i32) -> (i32, i32) {
    %c0_i32 = arith.constant 0 : i32
    %c0_i32_0 = arith.constant 0 : i32
    return %c0_i32, %arg0 : i32, i32
  }
}

</mosaic_0001>

<llo_original>
// kernel: tpu_custom_call.1
$region0: #{tpu_custom_call.1}
  #allocation0 [shape = 'u32[]', space=smem, size = 0x4, offset = 0x4, fixed_abs, tag = 'smem constant byte address 0x4 - core index']
  #allocation1 [shape = 'u32[144,128]{1,0:T(1,128)}', space=vmem, size = 0x12000, scoped, tag = 'internal scratch']
  #allocation2 [shape = 'f32[1,1]{1,0:T(1,128)S(1)}', space=vmem, size = 0x200, scoped, tag = 'scoped memory for tpu_custom_call.1']
  %s0 = inlined_call_operand.vmem [shape: bf16[128,128], index: 0, kind: input, shape index: {}]
  %s1 = inlined_call_operand.vmem [shape: bf16[128,128], index: 1, kind: input, shape index: {}]
  %s2 = inlined_call_operand.vmem [shape: f32[128,1], index: 2, kind: input, shape index: {}]
  %s3 = inlined_call_operand.vmem [shape: bf16[128,128], index: 3, kind: input, shape index: {}]
  %s4 = inlined_call_operand.vmem [shape: f32[128,1], index: 4, kind: input, shape index: {}]
  %s5 = inlined_call_operand.vmem [shape: f32[128,1], index: 5, kind: input, shape index: {}]
  %s6 = inlined_call_operand.<no memory space> [shape: f32[1,1], index: 6, kind: input, shape index: {}]
  %s7 = inlined_call_operand.hbm [shape: f32[1,128], index: 7, kind: output, shape index: {}]
  %s8 = sld [smem:[#allocation0]]
  $region38: #{tpu_custom_call.1} parent=0
    _
  %s10 = ssub.s32 1, %s8
  %s11 = scalar_select 0, %s10, %s8
  %v12 = vstv %s6
  %13 = vst [vmem:[#allocation2] sm:$0x1] %v12
  $region1: #{tpu_custom_call.1} parent=0
    #allocation3 [shape = 'u8[512]{0}', space=vmem, size = 0x400, scoped, tag = 'output window, operand 0, single buffered']
    #allocation4 [shape = 's32[1]{0}', space=sflag, size = 0x4, scoped, tag = 'scoped memory for tpu_custom_call.1']
    %14 = vsyncpa [#allocation4], 0
    // Predicated region
    $region2: #{tpu_custom_call.1} parent=1 // pred_check
      _
    $region3: #{tpu_custom_call.1} parent=1 // pred_check_branch
      %16 = sbr.rel (0) target = $region5
    $region4: #{tpu_custom_call.1} parent=1 // pred_region
      _
    $region5: #{tpu_custom_call.1} parent=1 // pred_fallthru
      _
    // Predicated region
    $region6: #{tpu_custom_call.1} parent=1 // pred_check
      _
    $region7: #{tpu_custom_call.1} parent=1 // pred_check_branch
      %18 = sbr.rel (0) target = $region9
    $region8: #{tpu_custom_call.1} parent=1 // pred_region
      _
    $region9: #{tpu_custom_call.1} parent=1 // pred_fallthru
      _
    // Predicated region
    $region10: #{tpu_custom_call.1} parent=1 // pred_check
      _
    $region11: #{tpu_custom_call.1} parent=1 // pred_check_branch
      %20 = sbr.rel (0) target = $region13
    $region12: #{tpu_custom_call.1} parent=1 // pred_region
      _
    $region13: #{tpu_custom_call.1} parent=1 // pred_fallthru
      _
    // Predicated region
    $region14: #{tpu_custom_call.1} parent=1 // pred_check
      _
    $region15: #{tpu_custom_call.1} parent=1 // pred_check_branch
      %22 = sbr.rel (0) target = $region17
    $region16: #{tpu_custom_call.1} parent=1 // pred_region
      _
    $region17: #{tpu_custom_call.1} parent=1 // pred_fallthru
      _
    // Predicated region
    $region18: #{tpu_custom_call.1} parent=1 // pred_check
      _
    $region19: #{tpu_custom_call.1} parent=1 // pred_check_branch
      %24 = sbr.rel (0) target = $region21
    $region20: #{tpu_custom_call.1} parent=1 // pred_region
      _
    $region21: #{tpu_custom_call.1} parent=1 // pred_fallthru
      _
    // Predicated region
    $region22: #{tpu_custom_call.1} parent=1 // pred_check
      _
    $region23: #{tpu_custom_call.1} parent=1 // pred_check_branch
      %26 = sbr.rel (0) target = $region25
    $region24: #{tpu_custom_call.1} parent=1 // pred_region
      _
    $region25: #{tpu_custom_call.1} parent=1 // pred_fallthru
      _
    // Predicated region
    $region26: #{tpu_custom_call.1} parent=1 // pred_check
      _
    $region27: #{tpu_custom_call.1} parent=1 // pred_check_branch
      %28 = sbr.rel (0) target = $region29
    $region28: #{tpu_custom_call.1} parent=1 // pred_region
      _
    $region29: #{tpu_custom_call.1} parent=1 // pred_fallthru
      _
    %v30 = vld [vmem:[%s0] sm:$0xf]
    %v31 = vld [vmem:[%s0 + $0x4] sm:$0xf]
    %v32 = vld [vmem:[%s0 + $0x8] sm:$0xf]
    %v33 = vld [vmem:[%s0 + $0xc] sm:$0xf]
    %v34 = vld [vmem:[%s0 + $0x10] sm:$0xf]
    %v35 = vld [vmem:[%s0 + $0x14] sm:$0xf]
    %v36 = vld [vmem:[%s0 + $0x18] sm:$0xf]
    %v37 = vld [vmem:[%s0 + $0x1c] sm:$0xf]
    %v38 = vld [vmem:[%s0 + $0x20] sm:$0xf]
    %v39 = vld [vmem:[%s0 + $0x24] sm:$0xf]
    %v40 = vld [vmem:[%s0 + $0x28] sm:$0xf]
    %v41 = vld [vmem:[%s0 + $0x2c] sm:$0xf]
    %v42 = vld [vmem:[%s0 + $0x30] sm:$0xf]
    %v43 = vld [vmem:[%s0 + $0x34] sm:$0xf]
    %v44 = vld [vmem:[%s0 + $0x38] sm:$0xf]
    %v45 = vld [vmem:[%s0 + $0x3c] sm:$0xf]
    %v46 = vld [vmem:[%s1] sm:$0xf]
    %v47 = vld [vmem:[%s1 + $0x4] sm:$0xf]
    %v48 = vld [vmem:[%s1 + $0x8] sm:$0xf]
    %v49 = vld [vmem:[%s1 + $0xc] sm:$0xf]
    %v50 = vld [vmem:[%s1 + $0x10] sm:$0xf]
    %v51 = vld [vmem:[%s1 + $0x14] sm:$0xf]
    %v52 = vld [vmem:[%s1 + $0x18] sm:$0xf]
    %v53 = vld [vmem:[%s1 + $0x1c] sm:$0xf]
    %v54 = vld [vmem:[%s1 + $0x20] sm:$0xf]
    %v55 = vld [vmem:[%s1 + $0x24] sm:$0xf]
    %v56 = vld [vmem:[%s1 + $0x28] sm:$0xf]
    %v57 = vld [vmem:[%s1 + $0x2c] sm:$0xf]
    %v58 = vld [vmem:[%s1 + $0x30] sm:$0xf]
    %v59 = vld [vmem:[%s1 + $0x34] sm:$0xf]
    %v60 = vld [vmem:[%s1 + $0x38] sm:$0xf]
    %v61 = vld [vmem:[%s1 + $0x3c] sm:$0xf]
    %v62 = vld [vmem:[%s2] sm:$0xff]
    %v63 = vld [vmem:[%s2 + $0x8] sm:$0xff]
    %v64 = vld [vmem:[%s2 + $0x10] sm:$0xff]
    %v65 = vld [vmem:[%s2 + $0x18] sm:$0xff]
    %v66 = vld [vmem:[%s2 + $0x20] sm:$0xff]
    %v67 = vld [vmem:[%s2 + $0x28] sm:$0xff]
    %v68 = vld [vmem:[%s2 + $0x30] sm:$0xff]
    %v69 = vld [vmem:[%s2 + $0x38] sm:$0xff]
    %v70 = vld [vmem:[%s2 + $0x40] sm:$0xff]
    %v71 = vld [vmem:[%s2 + $0x48] sm:$0xff]
    %v72 = vld [vmem:[%s2 + $0x50] sm:$0xff]
    %v73 = vld [vmem:[%s2 + $0x58] sm:$0xff]
    %v74 = vld [vmem:[%s2 + $0x60] sm:$0xff]
    %v75 = vld [vmem:[%s2 + $0x68] sm:$0xff]
    %v76 = vld [vmem:[%s2 + $0x70] sm:$0xff]
    %v77 = vld [vmem:[%s2 + $0x78] sm:$0xff]
    %79 = vset.pattern.permute.xlu0 0
    %80 = vperm.xlu0 %79, %v62
    %v81 = vpop.permute.xlu0 %80
    %84 = vset.pattern.permute.xlu0 0
    %85 = vperm.xlu0 %84, %v63
    %v86 = vpop.permute.xlu0 %85
    %89 = vset.pattern.permute.xlu0 0
    %90 = vperm.xlu0 %89, %v64
    %v91 = vpop.permute.xlu0 %90
    %94 = vset.pattern.permute.xlu0 0
    %95 = vperm.xlu0 %94, %v65
    %v96 = vpop.permute.xlu0 %95
    %99 = vset.pattern.permute.xlu0 0
    %100 = vperm.xlu0 %99, %v66
    %v101 = vpop.permute.xlu0 %100
    %104 = vset.pattern.permute.xlu0 0
    %105 = vperm.xlu0 %104, %v67
    %v106 = vpop.permute.xlu0 %105
    %109 = vset.pattern.permute.xlu0 0
    %110 = vperm.xlu0 %109, %v68
    %v111 = vpop.permute.xlu0 %110
    %114 = vset.pattern.permute.xlu0 0
    %115 = vperm.xlu0 %114, %v69
    %v116 = vpop.permute.xlu0 %115
    %119 = vset.pattern.permute.xlu0 0
    %120 = vperm.xlu0 %119, %v70
    %v121 = vpop.permute.xlu0 %120
    %124 = vset.pattern.permute.xlu0 0
    %125 = vperm.xlu0 %124, %v71
    %v126 = vpop.permute.xlu0 %125
    %129 = vset.pattern.permute.xlu0 0
    %130 = vperm.xlu0 %129, %v72
    %v131 = vpop.permute.xlu0 %130
    %134 = vset.pattern.permute.xlu0 0
    %135 = vperm.xlu0 %134, %v73
    %v136 = vpop.permute.xlu0 %135
    %139 = vset.pattern.permute.xlu0 0
    %140 = vperm.xlu0 %139, %v74
    %v141 = vpop.permute.xlu0 %140
    %144 = vset.pattern.permute.xlu0 0
    %145 = vperm.xlu0 %144, %v75
    %v146 = vpop.permute.xlu0 %145
    %149 = vset.pattern.permute.xlu0 0
    %150 = vperm.xlu0 %149, %v76
    %v151 = vpop.permute.xlu0 %150
    %154 = vset.pattern.permute.xlu0 0
    %155 = vperm.xlu0 %154, %v77
    %v156 = vpop.permute.xlu0 %155
    %v174 = vunpack.c.l.b16 %v46
    %v175 = vunpack.c.l.b16 %v47
    %v176 = vunpack.c.l.b16 %v48
    %v177 = vunpack.c.l.b16 %v49
    %v178 = vunpack.c.l.b16 %v50
    %v179 = vunpack.c.l.b16 %v51
    %v180 = vunpack.c.l.b16 %v52
    %v181 = vunpack.c.l.b16 %v53
    %v182 = vunpack.c.l.b16 %v54
    %v183 = vunpack.c.l.b16 %v55
    %v184 = vunpack.c.l.b16 %v56
    %v185 = vunpack.c.l.b16 %v57
    %v186 = vunpack.c.l.b16 %v58
    %v187 = vunpack.c.l.b16 %v59
    %v188 = vunpack.c.l.b16 %v60
    %v189 = vunpack.c.l.b16 %v61
    %v190 = vpack.c.b16 %v175, %v174
    %v191 = vpack.c.b16 %v177, %v176
    %v192 = vpack.c.b16 %v179, %v178
    %v193 = vpack.c.b16 %v181, %v180
    %v194 = vpack.c.b16 %v183, %v182
    %v195 = vpack.c.b16 %v185, %v184
    %v196 = vpack.c.b16 %v187, %v186
    %v197 = vpack.c.b16 %v189, %v188
    %v222 = vunpack.c.l.b16 %v30
    %v223 = vunpack.c.l.b16 %v31
    %v224 = vunpack.c.l.b16 %v32
    %v225 = vunpack.c.l.b16 %v33
    %v226 = vunpack.c.l.b16 %v34
    %v227 = vunpack.c.l.b16 %v35
    %v228 = vunpack.c.l.b16 %v36
    %v229 = vunpack.c.l.b16 %v37
    %v230 = vunpack.c.l.b16 %v38
    %v231 = vunpack.c.l.b16 %v39
    %v232 = vunpack.c.l.b16 %v40
    %v233 = vunpack.c.l.b16 %v41
    %v234 = vunpack.c.l.b16 %v42
    %v235 = vunpack.c.l.b16 %v43
    %v236 = vunpack.c.l.b16 %v44
    %v237 = vunpack.c.l.b16 %v45
    %v238 = vpack.c.b16 %v223, %v222
    %v239 = vpack.c.b16 %v225, %v224
    %v240 = vpack.c.b16 %v227, %v226
    %v241 = vpack.c.b16 %v229, %v228
    %v242 = vpack.c.b16 %v231, %v230
    %v243 = vpack.c.b16 %v233, %v232
    %v244 = vpack.c.b16 %v235, %v234
    %v245 = vpack.c.b16 %v237, %v236
    %254 = vmatprep.subr.bf16.mxu0 0
    %255 = vmatpush1.bf16.msra.mxu0 %v238
    %256 = vmatprep.subr.bf16.mxu0 0
    %257 = vmatpush1.bf16.msra.mxu0 %v239
    %258 = vmatprep.subr.bf16.mxu0 0
    %259 = vmatpush1.bf16.msra.mxu0 %v240
    %260 = vmatprep.subr.bf16.mxu0 0
    %261 = vmatpush1.bf16.msra.mxu0 %v241
    %262 = vmatprep.subr.bf16.mxu0 0
    %263 = vmatpush1.bf16.msra.mxu0 %v242
    %264 = vmatprep.subr.bf16.mxu0 0
    %265 = vmatpush1.bf16.msra.mxu0 %v243
    %266 = vmatprep.subr.bf16.mxu0 0
    %267 = vmatpush1.bf16.msra.mxu0 %v244
    %268 = vmatprep.subr.bf16.mxu0 0
    %269 = vmatpush1.bf16.msra.mxu0 %v245
    %270 = vmatprep.subr.bf16.mxu0 0
    %271 = vmatpush1.bf16.msra.mxu0 0
    %272 = vmatprep.subr.bf16.mxu0 0
    %273 = vmatpush1.bf16.msra.mxu0 0
    %274 = vmatprep.subr.bf16.mxu0 0
    %275 = vmatpush1.bf16.msra.mxu0 0
    %276 = vmatprep.subr.bf16.mxu0 0
    %277 = vmatpush1.bf16.msra.mxu0 0
    %278 = vmatprep.subr.bf16.mxu0 0
    %279 = vmatpush1.bf16.msra.mxu0 0
    %280 = vmatprep.subr.bf16.mxu0 0
    %281 = vmatpush1.bf16.msra.mxu0 0
    %282 = vmatprep.subr.bf16.mxu0 0
    %283 = vmatpush1.bf16.msra.mxu0 0
    %284 = vmatprep.subr.bf16.mxu0 0
    %285 = vmatpush1.bf16.msra.mxu0 0
    %286 = vmatprep.mubr.bf16.mxu0 0
    %287 = vmatmul.mubr.bf16.gmra.mrb[0].mxu0 %v190
    %v288 = vpop.f32.mrb[0].mxu0
    %v289 = vadd.f32 %v81, %v288
    %v290 = vpop.f32.mrb[0].mxu0
    %v291 = vpop.f32.mrb[0].mxu0
    %v292 = vadd.f32 %v86, %v291
    %v293 = vpop.f32.mrb[0].mxu0
    %294 = vmatprep.mubr.bf16.mxu0 0
    %295 = vmatmul.mubr.bf16.gmra.mrb[0].mxu0 %v191
    %v296 = vpop.f32.mrb[0].mxu0
    %v297 = vadd.f32 %v91, %v296
    %v298 = vpop.f32.mrb[0].mxu0
    %v299 = vpop.f32.mrb[0].mxu0
    %v300 = vadd.f32 %v96, %v299
    %v301 = vpop.f32.mrb[0].mxu0
    %302 = vmatprep.mubr.bf16.mxu0 0
    %303 = vmatmul.mubr.bf16.gmra.mrb[0].mxu0 %v192
    %v304 = vpop.f32.mrb[0].mxu0
    %v305 = vadd.f32 %v101, %v304
    %v306 = vpop.f32.mrb[0].mxu0
    %v307 = vpop.f32.mrb[0].mxu0
    %v308 = vadd.f32 %v106, %v307
    %v309 = vpop.f32.mrb[0].mxu0
    %310 = vmatprep.mubr.bf16.mxu0 0
    %311 = vmatmul.mubr.bf16.gmra.mrb[0].mxu0 %v193
    %v312 = vpop.f32.mrb[0].mxu0
    %v313 = vadd.f32 %v111, %v312
    %v314 = vpop.f32.mrb[0].mxu0
    %v315 = vpop.f32.mrb[0].mxu0
    %v316 = vadd.f32 %v116, %v315
    %v317 = vpop.f32.mrb[0].mxu0
    %318 = vmatprep.mubr.bf16.mxu0 0
    %319 = vmatmul.mubr.bf16.gmra.mrb[0].mxu0 %v194
    %v320 = vpop.f32.mrb[0].mxu0
    %v321 = vadd.f32 %v121, %v320
    %v322 = vpop.f32.mrb[0].mxu0
    %v323 = vpop.f32.mrb[0].mxu0
    %v324 = vadd.f32 %v126, %v323
    %v325 = vpop.f32.mrb[0].mxu0
    %326 = vmatprep.mubr.bf16.mxu0 0
    %327 = vmatmul.mubr.bf16.gmra.mrb[0].mxu0 %v195
    %v328 = vpop.f32.mrb[0].mxu0
    %v329 = vadd.f32 %v131, %v328
    %v330 = vpop.f32.mrb[0].mxu0
    %v331 = vpop.f32.mrb[0].mxu0
    %v332 = vadd.f32 %v136, %v331
    %v333 = vpop.f32.mrb[0].mxu0
    %334 = vmatprep.mubr.bf16.mxu0 0
    %335 = vmatmul.mubr.bf16.gmra.mrb[0].mxu0 %v196
    %v336 = vpop.f32.mrb[0].mxu0
    %v337 = vadd.f32 %v141, %v336
    %v338 = vpop.f32.mrb[0].mxu0
    %v339 = vpop.f32.mrb[0].mxu0
    %v340 = vadd.f32 %v146, %v339
    %v341 = vpop.f32.mrb[0].mxu0
    %342 = vmatprep.mubr.bf16.mxu0 0
    %343 = vmatmul.mubr.bf16.gmra.mrb[0].mxu0 %v197
    %v344 = vpop.f32.mrb[0].mxu0
    %v345 = vadd.f32 %v151, %v344
    %v346 = vpop.f32.mrb[0].mxu0
    %v347 = vpop.f32.mrb[0].mxu0
    %v348 = vadd.f32 %v156, %v347
    %v349 = vpop.f32.mrb[0].mxu0
    %350 = vdwg.mxu0
    %v351 = vmax.f32 %v289, 0.0
    %v352 = vmax.f32 %v292, 0.0
    %v353 = vmax.f32 %v297, 0.0
    %v354 = vmax.f32 %v300, 0.0
    %v355 = vmax.f32 %v305, 0.0
    %v356 = vmax.f32 %v308, 0.0
    %v357 = vmax.f32 %v313, 0.0
    %v358 = vmax.f32 %v316, 0.0
    %v359 = vmax.f32 %v321, 0.0
    %v360 = vmax.f32 %v324, 0.0
    %v361 = vmax.f32 %v329, 0.0
    %v362 = vmax.f32 %v332, 0.0
    %v363 = vmax.f32 %v337, 0.0
    %v364 = vmax.f32 %v340, 0.0
    %v365 = vmax.f32 %v345, 0.0
    %v366 = vmax.f32 %v348, 0.0
    %v367 = vld [vmem:[%s3] sm:$0xf]
    %v368 = vld [vmem:[%s3 + $0x4] sm:$0xf]
    %v369 = vld [vmem:[%s3 + $0x8] sm:$0xf]
    %v370 = vld [vmem:[%s3 + $0xc] sm:$0xf]
    %v371 = vld [vmem:[%s3 + $0x10] sm:$0xf]
    %v372 = vld [vmem:[%s3 + $0x14] sm:$0xf]
    %v373 = vld [vmem:[%s3 + $0x18] sm:$0xf]
    %v374 = vld [vmem:[%s3 + $0x1c] sm:$0xf]
    %v375 = vld [vmem:[%s3 + $0x20] sm:$0xf]
    %v376 = vld [vmem:[%s3 + $0x24] sm:$0xf]
    %v377 = vld [vmem:[%s3 + $0x28] sm:$0xf]
    %v378 = vld [vmem:[%s3 + $0x2c] sm:$0xf]
    %v379 = vld [vmem:[%s3 + $0x30] sm:$0xf]
    %v380 = vld [vmem:[%s3 + $0x34] sm:$0xf]
    %v381 = vld [vmem:[%s3 + $0x38] sm:$0xf]
    %v382 = vld [vmem:[%s3 + $0x3c] sm:$0xf]
    %v383 = vpack.c.bf16 %v352, %v351
    %v384 = vpack.c.bf16 %v354, %v353
    %v385 = vpack.c.bf16 %v356, %v355
    %v386 = vpack.c.bf16 %v358, %v357
    %v387 = vpack.c.bf16 %v360, %v359
    %v388 = vpack.c.bf16 %v362, %v361
    %v389 = vpack.c.bf16 %v364, %v363
    %v390 = vpack.c.bf16 %v366, %v365
    %v391 = vld [vmem:[%s4] sm:$0xff]
    %v392 = vld [vmem:[%s4 + $0x8] sm:$0xff]
    %v393 = vld [vmem:[%s4 + $0x10] sm:$0xff]
    %v394 = vld [vmem:[%s4 + $0x18] sm:$0xff]
    %v395 = vld [vmem:[%s4 + $0x20] sm:$0xff]
    %v396 = vld [vmem:[%s4 + $0x28] sm:$0xff]
    %v397 = vld [vmem:[%s4 + $0x30] sm:$0xff]
    %v398 = vld [vmem:[%s4 + $0x38] sm:$0xff]
    %v399 = vld [vmem:[%s4 + $0x40] sm:$0xff]
    %v400 = vld [vmem:[%s4 + $0x48] sm:$0xff]
    %v401 = vld [vmem:[%s4 + $0x50] sm:$0xff]
    %v402 = vld [vmem:[%s4 + $0x58] sm:$0xff]
    %v403 = vld [vmem:[%s4 + $0x60] sm:$0xff]
    %v404 = vld [vmem:[%s4 + $0x68] sm:$0xff]
    %v405 = vld [vmem:[%s4 + $0x70] sm:$0xff]
    %v406 = vld [vmem:[%s4 + $0x78] sm:$0xff]
    %408 = vset.pattern.permute.xlu0 0
    %409 = vperm.xlu0 %408, %v391
    %v410 = vpop.permute.xlu0 %409
    %413 = vset.pattern.permute.xlu0 0
    %414 = vperm.xlu0 %413, %v392
    %v415 = vpop.permute.xlu0 %414
    %418 = vset.pattern.permute.xlu0 0
    %419 = vperm.xlu0 %418, %v393
    %v420 = vpop.permute.xlu0 %419
    %423 = vset.pattern.permute.xlu0 0
    %424 = vperm.xlu0 %423, %v394
    %v425 = vpop.permute.xlu0 %424
    %428 = vset.pattern.permute.xlu0 0
    %429 = vperm.xlu0 %428, %v395
    %v430 = vpop.permute.xlu0 %429
    %433 = vset.pattern.permute.xlu0 0
    %434 = vperm.xlu0 %433, %v396
    %v435 = vpop.permute.xlu0 %434
    %438 = vset.pattern.permute.xlu0 0
    %439 = vperm.xlu0 %438, %v397
    %v440 = vpop.permute.xlu0 %439
    %443 = vset.pattern.permute.xlu0 0
    %444 = vperm.xlu0 %443, %v398
    %v445 = vpop.permute.xlu0 %444
    %448 = vset.pattern.permute.xlu0 0
    %449 = vperm.xlu0 %448, %v399
    %v450 = vpop.permute.xlu0 %449
    %453 = vset.pattern.permute.xlu0 0
    %454 = vperm.xlu0 %453, %v400
    %v455 = vpop.permute.xlu0 %454
    %458 = vset.pattern.permute.xlu0 0
    %459 = vperm.xlu0 %458, %v401
    %v460 = vpop.permute.xlu0 %459
    %463 = vset.pattern.permute.xlu0 0
    %464 = vperm.xlu0 %463, %v402
    %v465 = vpop.permute.xlu0 %464
    %468 = vset.pattern.permute.xlu0 0
    %469 = vperm.xlu0 %468, %v403
    %v470 = vpop.permute.xlu0 %469
    %473 = vset.pattern.permute.xlu0 0
    %474 = vperm.xlu0 %473, %v404
    %v475 = vpop.permute.xlu0 %474
    %478 = vset.pattern.permute.xlu0 0
    %479 = vperm.xlu0 %478, %v405
    %v480 = vpop.permute.xlu0 %479
    %483 = vset.pattern.permute.xlu0 0
    %484 = vperm.xlu0 %483, %v406
    %v485 = vpop.permute.xlu0 %484
    %v503 = vunpack.c.l.b16 %v367
    %v504 = vunpack.c.l.b16 %v368
    %v505 = vunpack.c.l.b16 %v369
    %v506 = vunpack.c.l.b16 %v370
    %v507 = vunpack.c.l.b16 %v371
    %v508 = vunpack.c.l.b16 %v372
    %v509 = vunpack.c.l.b16 %v373
    %v510 = vunpack.c.l.b16 %v374
    %v511 = vunpack.c.l.b16 %v375
    %v512 = vunpack.c.l.b16 %v376
    %v513 = vunpack.c.l.b16 %v377
    %v514 = vunpack.c.l.b16 %v378
    %v515 = vunpack.c.l.b16 %v379
    %v516 = vunpack.c.l.b16 %v380
    %v517 = vunpack.c.l.b16 %v381
    %v518 = vunpack.c.l.b16 %v382
    %v519 = vpack.c.b16 %v504, %v503
    %v520 = vpack.c.b16 %v506, %v505
    %v521 = vpack.c.b16 %v508, %v507
    %v522 = vpack.c.b16 %v510, %v509
    %v523 = vpack.c.b16 %v512, %v511
    %v524 = vpack.c.b16 %v514, %v513
    %v525 = vpack.c.b16 %v516, %v515
    %v526 = vpack.c.b16 %v518, %v517
    %535 = vmatprep.subr.bf16.mxu0 0
    %536 = vmatpush1.bf16.msra.mxu0 %v383
    %537 = vmatprep.subr.bf16.mxu0 0
    %538 = vmatpush1.bf16.msra.mxu0 %v384
    %539 = vmatprep.subr.bf16.mxu0 0
    %540 = vmatpush1.bf16.msra.mxu0 %v385
    %541 = vmatprep.subr.bf16.mxu0 0
    %542 = vmatpush1.bf16.msra.mxu0 %v386
    %543 = vmatprep.subr.bf16.mxu0 0
    %544 = vmatpush1.bf16.msra.mxu0 %v387
    %545 = vmatprep.subr.bf16.mxu0 0
    %546 = vmatpush1.bf16.msra.mxu0 %v388
    %547 = vmatprep.subr.bf16.mxu0 0
    %548 = vmatpush1.bf16.msra.mxu0 %v389
    %549 = vmatprep.subr.bf16.mxu0 0
    %550 = vmatpush1.bf16.msra.mxu0 %v390
    %551 = vmatprep.subr.bf16.mxu0 0
    %552 = vmatpush1.bf16.msra.mxu0 0
    %553 = vmatprep.subr.bf16.mxu0 0
    %554 = vmatpush1.bf16.msra.mxu0 0
    %555 = vmatprep.subr.bf16.mxu0 0
    %556 = vmatpush1.bf16.msra.mxu0 0
    %557 = vmatprep.subr.bf16.mxu0 0
    %558 = vmatpush1.bf16.msra.mxu0 0
    %559 = vmatprep.subr.bf16.mxu0 0
    %560 = vmatpush1.bf16.msra.mxu0 0
    %561 = vmatprep.subr.bf16.mxu0 0
    %562 = vmatpush1.bf16.msra.mxu0 0
    %563 = vmatprep.subr.bf16.mxu0 0
    %564 = vmatpush1.bf16.msra.mxu0 0
    %565 = vmatprep.subr.bf16.mxu0 0
    %566 = vmatpush1.bf16.msra.mxu0 0
    %567 = vmatprep.mubr.bf16.mxu0 0
    %568 = vmatmul.mubr.bf16.gmra.mrb[0].mxu0 %v519
    %v569 = vpop.f32.mrb[0].mxu0
    %v570 = vadd.f32 %v410, %v569
    %v571 = vpop.f32.mrb[0].mxu0
    %v572 = vpop.f32.mrb[0].mxu0
    %v573 = vadd.f32 %v415, %v572
    %v574 = vpop.f32.mrb[0].mxu0
    %575 = vmatprep.mubr.bf16.mxu0 0
    %576 = vmatmul.mubr.bf16.gmra.mrb[0].mxu0 %v520
    %v577 = vpop.f32.mrb[0].mxu0
    %v578 = vadd.f32 %v420, %v577
    %v579 = vpop.f32.mrb[0].mxu0
    %v580 = vpop.f32.mrb[0].mxu0
    %v581 = vadd.f32 %v425, %v580
    %v582 = vpop.f32.mrb[0].mxu0
    %583 = vmatprep.mubr.bf16.mxu0 0
    %584 = vmatmul.mubr.bf16.gmra.mrb[0].mxu0 %v521
    %v585 = vpop.f32.mrb[0].mxu0
    %v586 = vadd.f32 %v430, %v585
    %v587 = vpop.f32.mrb[0].mxu0
    %v588 = vpop.f32.mrb[0].mxu0
    %v589 = vadd.f32 %v435, %v588
    %v590 = vpop.f32.mrb[0].mxu0
    %591 = vmatprep.mubr.bf16.mxu0 0
    %592 = vmatmul.mubr.bf16.gmra.mrb[0].mxu0 %v522
    %v593 = vpop.f32.mrb[0].mxu0
    %v594 = vadd.f32 %v440, %v593
    %v595 = vpop.f32.mrb[0].mxu0
    %v596 = vpop.f32.mrb[0].mxu0
    %v597 = vadd.f32 %v445, %v596
    %v598 = vpop.f32.mrb[0].mxu0
    %599 = vmatprep.mubr.bf16.mxu0 0
    %600 = vmatmul.mubr.bf16.gmra.mrb[0].mxu0 %v523
    %v601 = vpop.f32.mrb[0].mxu0
    %v602 = vadd.f32 %v450, %v601
    %v603 = vpop.f32.mrb[0].mxu0
    %v604 = vpop.f32.mrb[0].mxu0
    %v605 = vadd.f32 %v455, %v604
    %v606 = vpop.f32.mrb[0].mxu0
    %607 = vmatprep.mubr.bf16.mxu0 0
    %608 = vmatmul.mubr.bf16.gmra.mrb[0].mxu0 %v524
    %v609 = vpop.f32.mrb[0].mxu0
    %v610 = vadd.f32 %v460, %v609
    %v611 = vpop.f32.mrb[0].mxu0
    %v612 = vpop.f32.mrb[0].mxu0
    %v613 = vadd.f32 %v465, %v612
    %v614 = vpop.f32.mrb[0].mxu0
    %615 = vmatprep.mubr.bf16.mxu0 0
    %616 = vmatmul.mubr.bf16.gmra.mrb[0].mxu0 %v525
    %v617 = vpop.f32.mrb[0].mxu0
    %v618 = vadd.f32 %v470, %v617
    %v619 = vpop.f32.mrb[0].mxu0
    %v620 = vpop.f32.mrb[0].mxu0
    %v621 = vadd.f32 %v475, %v620
    %v622 = vpop.f32.mrb[0].mxu0
    %623 = vmatprep.mubr.bf16.mxu0 0
    %624 = vmatmul.mubr.bf16.gmra.mrb[0].mxu0 %v526
    %v625 = vpop.f32.mrb[0].mxu0
    %v626 = vadd.f32 %v480, %v625
    %v627 = vpop.f32.mrb[0].mxu0
    %v628 = vpop.f32.mrb[0].mxu0
    %v629 = vadd.f32 %v485, %v628
    %v630 = vpop.f32.mrb[0].mxu0
    %631 = vdwg.mxu0
    %v632 = vmax.f32 %v570, 0.0
    %v633 = vmax.f32 %v573, 0.0
    %v634 = vmax.f32 %v578, 0.0
    %v635 = vmax.f32 %v581, 0.0
    %v636 = vmax.f32 %v586, 0.0
    %v637 = vmax.f32 %v589, 0.0
    %v638 = vmax.f32 %v594, 0.0
    %v639 = vmax.f32 %v597, 0.0
    %v640 = vmax.f32 %v602, 0.0
    %v641 = vmax.f32 %v605, 0.0
    %v642 = vmax.f32 %v610, 0.0
    %v643 = vmax.f32 %v613, 0.0
    %v644 = vmax.f32 %v618, 0.0
    %v645 = vmax.f32 %v621, 0.0
    %v646 = vmax.f32 %v626, 0.0
    %v647 = vmax.f32 %v629, 0.0
    %v648 = vld [vmem:[%s5] sm:$0xff]
    %v649 = vld [vmem:[%s5 + $0x8] sm:$0xff]
    %v650 = vld [vmem:[%s5 + $0x10] sm:$0xff]
    %v651 = vld [vmem:[%s5 + $0x18] sm:$0xff]
    %v652 = vld [vmem:[%s5 + $0x20] sm:$0xff]
    %v653 = vld [vmem:[%s5 + $0x28] sm:$0xff]
    %v654 = vld [vmem:[%s5 + $0x30] sm:$0xff]
    %v655 = vld [vmem:[%s5 + $0x38] sm:$0xff]
    %v656 = vld [vmem:[%s5 + $0x40] sm:$0xff]
    %v657 = vld [vmem:[%s5 + $0x48] sm:$0xff]
    %v658 = vld [vmem:[%s5 + $0x50] sm:$0xff]
    %v659 = vld [vmem:[%s5 + $0x58] sm:$0xff]
    %v660 = vld [vmem:[%s5 + $0x60] sm:$0xff]
    %v661 = vld [vmem:[%s5 + $0x68] sm:$0xff]
    %v662 = vld [vmem:[%s5 + $0x70] sm:$0xff]
    %v663 = vld [vmem:[%s5 + $0x78] sm:$0xff]
    %665 = vset.pattern.permute.xlu0 0
    %666 = vperm.xlu0 %665, %v648
    %v667 = vpop.permute.xlu0 %666
    %670 = vset.pattern.permute.xlu0 0
    %671 = vperm.xlu0 %670, %v649
    %v672 = vpop.permute.xlu0 %671
    %675 = vset.pattern.permute.xlu0 0
    %676 = vperm.xlu0 %675, %v650
    %v677 = vpop.permute.xlu0 %676
    %680 = vset.pattern.permute.xlu0 0
    %681 = vperm.xlu0 %680, %v651
    %v682 = vpop.permute.xlu0 %681
    %685 = vset.pattern.permute.xlu0 0
    %686 = vperm.xlu0 %685, %v652
    %v687 = vpop.permute.xlu0 %686
    %690 = vset.pattern.permute.xlu0 0
    %691 = vperm.xlu0 %690, %v653
    %v692 = vpop.permute.xlu0 %691
    %695 = vset.pattern.permute.xlu0 0
    %696 = vperm.xlu0 %695, %v654
    %v697 = vpop.permute.xlu0 %696
    %700 = vset.pattern.permute.xlu0 0
    %701 = vperm.xlu0 %700, %v655
    %v702 = vpop.permute.xlu0 %701
    %705 = vset.pattern.permute.xlu0 0
    %706 = vperm.xlu0 %705, %v656
    %v707 = vpop.permute.xlu0 %706
    %710 = vset.pattern.permute.xlu0 0
    %711 = vperm.xlu0 %710, %v657
    %v712 = vpop.permute.xlu0 %711
    %715 = vset.pattern.permute.xlu0 0
    %716 = vperm.xlu0 %715, %v658
    %v717 = vpop.permute.xlu0 %716
    %720 = vset.pattern.permute.xlu0 0
    %721 = vperm.xlu0 %720, %v659
    %v722 = vpop.permute.xlu0 %721
    %725 = vset.pattern.permute.xlu0 0
    %726 = vperm.xlu0 %725, %v660
    %v727 = vpop.permute.xlu0 %726
    %730 = vset.pattern.permute.xlu0 0
    %731 = vperm.xlu0 %730, %v661
    %v732 = vpop.permute.xlu0 %731
    %735 = vset.pattern.permute.xlu0 0
    %736 = vperm.xlu0 %735, %v662
    %v737 = vpop.permute.xlu0 %736
    %740 = vset.pattern.permute.xlu0 0
    %741 = vperm.xlu0 %740, %v663
    %v742 = vpop.permute.xlu0 %741
    %v744 = vmul.f32 %v632, %v667
    %v745 = vmul.f32 %v633, %v672
    %v746 = vmul.f32 %v634, %v677
    %v747 = vmul.f32 %v635, %v682
    %v748 = vmul.f32 %v636, %v687
    %v749 = vmul.f32 %v637, %v692
    %v750 = vmul.f32 %v638, %v697
    %v751 = vmul.f32 %v639, %v702
    %v752 = vmul.f32 %v640, %v707
    %v753 = vmul.f32 %v641, %v712
    %v754 = vmul.f32 %v642, %v717
    %v755 = vmul.f32 %v643, %v722
    %v756 = vmul.f32 %v644, %v727
    %v757 = vmul.f32 %v645, %v732
    %v758 = vmul.f32 %v646, %v737
    %v759 = vmul.f32 %v647, %v742
    %v760 = vadd.f32 %v744, %v745
    %v761 = vadd.f32 %v760, %v746
    %v762 = vadd.f32 %v761, %v747
    %v763 = vadd.f32 %v762, %v748
    %v764 = vadd.f32 %v763, %v749
    %v765 = vadd.f32 %v764, %v750
    %v766 = vadd.f32 %v765, %v751
    %v767 = vadd.f32 %v766, %v752
    %v768 = vadd.f32 %v767, %v753
    %v769 = vadd.f32 %v768, %v754
    %v770 = vadd.f32 %v769, %v755
    %v771 = vadd.f32 %v770, %v756
    %v772 = vadd.f32 %v771, %v757
    %v773 = vadd.f32 %v772, %v758
    %v774 = vadd.f32 %v773, %v759
    %v775 = vrot.slane %v774, 4
    %v776 = vadd.f32 %v774, %v775
    %v777 = vrot.slane %v776, 2
    %v778 = vadd.f32 %v776, %v777
    %v779 = vrot.slane %v778, 1
    %v780 = vadd.f32 %v778, %v779
    %v781 = vld [vmem:[#allocation2] sm:$0x1]
    %783 = vset.pattern.permute.xlu0 0
    %784 = vperm.xlu0 %783, %v781
    %v785 = vpop.permute.xlu0 %784
    %v787 = vlaneseq
    %v788 = vshrl.u32 %v787, 7
    %v789 = vsub.s32 0, %v788
    %v790 = vrot.slane %v785, %v789
    %v791 = vadd.f32 %v780, %v790
    %792 = vst [vmem:[#allocation3] sm:$0x1] %v791
    // Predicated region
    $region30: #{tpu_custom_call.1} parent=1 // pred_check
      _
    $region31: #{tpu_custom_call.1} parent=1 // pred_check_branch
      %794 = sbr.rel (0) target = $region33
    $region32: #{tpu_custom_call.1} parent=1 // pred_region
      %s796 = ssub.s32 16, 16
      %797 = vsyncadd [#allocation4], %s796
      %s799 = sshll.u32 [#allocation3], 4
      %s800 = int_to_ptr.vmem [resolvable:$true] %s799
      %802 = dma.vmem_to_hbm [thread:$0]  %s800, 16, %s7, [#allocation4]
    $region33: #{tpu_custom_call.1} parent=1 // pred_fallthru
      _
    // Predicated region
    $region34: #{tpu_custom_call.1} parent=1 // pred_check
      _
    $region35: #{tpu_custom_call.1} parent=1 // pred_check_branch
      %804 = sbr.rel (0) target = $region37
    $region36: #{tpu_custom_call.1} parent=1 // pred_region
      %805 = dma.done [#allocation4], 16
    $region37: #{tpu_custom_call.1} parent=1 // pred_fallthru
      _
    %806 = vsyncpa [#allocation4], 1

</llo_original>
